<compile_context>
chip_gen: v7x
topology: tpu7x:2x2x1
jax: 0.10.0
libtpu: 0.0.40
codegen_flags: <defaults>
</compile_context>

<pallas_src>
import jax
import jax.numpy as jnp
from jax.experimental import pallas as pl
from jax.experimental.pallas import tpu as pltpu

LANES = 128


def _round_up(n, m):
    return ((n + m - 1) // m) * m


def _pick_batch_tile(B):
    # Prefer large MXU-friendly tiles, but keep >= 2 grid steps so the
    # "parallel" batch axis can shard across both TensorCores on v7x.
    for bt in (256, 128, 64, 32, 16, 8):
        if B % bt == 0 and B // bt >= 2:
            return bt
    return B  # tiny batch: single whole-batch tile


# ------------------------------ fused kernel -------------------------------

def _siamese_kernel(x1_ref, x2_ref, w1d_ref, b1_ref, w2_ref, b2_ref,
                    w3_ref, b3_ref, wp_ref, bp_ref, o_ref):
    """enc(x1), enc(x2), |e1-e2| and predictor head in a single launch."""
    bt = x1_ref.shape[0]

    # Both branches share weights: stack the two resident VMEM tiles along the
    # sublane axis and run the encoder ONCE on (2*bt, IDp).
    x = jnp.concatenate([x1_ref[...], x2_ref[...]], axis=0)          # bf16

    # Stage 1: block-diagonal W1 == per-instance Linear(D->H1) followed by
    # row-major nn.Flatten (column i*H1 + j <-> instance i, feature j).
    h1 = jnp.dot(x, w1d_ref[...],
                 preferred_element_type=jnp.float32) + b1_ref[...]
    h1 = jnp.maximum(h1, 0.0)

    # Stage 2: Linear(I*H1 -> H2) + ReLU.
    h2 = jnp.dot(h1.astype(w2_ref.dtype), w2_ref[...],
                 preferred_element_type=jnp.float32) + b2_ref[...]
    h2 = jnp.maximum(h2, 0.0)

    # Stage 3: Linear(H2 -> E)  (embedding).
    e = jnp.dot(h2.astype(w3_ref.dtype), w3_ref[...],
                preferred_element_type=jnp.float32) + b3_ref[...]

    dis = jnp.abs(e[:bt, :] - e[bt:, :])                             # (bt, Ep)

    # Predictor Linear(E -> 1): N=1 matmul wastes 127/128 MXU lanes, so do it
    # as a VPU multiply + cross-lane reduce (padded columns are zero -> inert).
    pred = jnp.sum(dis * wp_ref[...], axis=-1, keepdims=True) + bp_ref[...]

    # Lane-dense store; wrapper slices column 0.
    o_ref[...] = jnp.broadcast_to(pred, o_ref.shape)


# ------------------------------ model wrapper ------------------------------

def siamese_forward(params, x1, x2):
    """Pallas implementation of SiameseNetwork.forward(input1, input2)."""
    w1d, b1t, w2p, b2p, w3p, b3p, wpp, bp = params
    B, I, D = x1.shape
    ID = I * D
    IDp = w1d.shape[0]

    # Free row-major view + lane padding + bf16 operand cast (wrapper side).
    def prep(x):
        xf = x.reshape(B, ID)
        if IDp != ID:
            xf = jnp.pad(xf, ((0, 0), (0, IDp - ID)))
        return xf.astype(jnp.bfloat16)

    x1f, x2f = prep(x1), prep(x2)

    bt = _pick_batch_tile(B)
    assert B % bt == 0
    grid = (B // bt,)

    x_spec = pl.BlockSpec((bt, IDp), lambda b: (b, 0))

    def full(shape):  # weights / biases: whole-array, resident across grid
        return pl.BlockSpec(shape, lambda b, _nd=len(shape): (0,) * _nd)

    out = pl.pallas_call(
        _siamese_kernel,
        out_shape=jax.ShapeDtypeStruct((B, LANES), jnp.float32),
        grid=grid,
        in_specs=[
            x_spec, x_spec,
            full(w1d.shape), full(b1t.shape),
            full(w2p.shape), full(b2p.shape),
            full(w3p.shape), full(b3p.shape),
            full(wpp.shape), full(bp.shape),
        ],
        out_specs=pl.BlockSpec((bt, LANES), lambda b: (b, 0)),
        compiler_params=pltpu.CompilerParams(
            dimension_semantics=("parallel",)),  # megacore-shardable on v7x
    )(x1f, x2f, w1d, b1t, w2p, b2p, w3p, b3p, wpp, bp)

    return out[:, 0]  # (B,) — matches .flatten() of the (B,1) predictor output


# ------------------------------ params & init ------------------------------

def _linear_init(key, fan_in, fan_out):
    # PyTorch nn.Linear default: U(-1/sqrt(fan_in), 1/sqrt(fan_in)).
    # Stored transposed (in, out) so kernels compute x @ W.
    kw, kb = jax.random.split(key)
    bound = 1.0 / float(fan_in) ** 0.5
    w = jax.random.uniform(kw, (fan_in, fan_out), jnp.float32, -bound, bound)
    b = jax.random.uniform(kb, (1, fan_out), jnp.float32, -bound, bound)
    return w, b


def prep_params(w1, b1, w2, b2, w3, b3, wp, bp, n_instance):
    """Build lane-padded, bf16 kernel params.

    * W1d = blkdiag(w1 x n_instance): row block i / col block i holds w1, so
      x_flat @ W1d reproduces per-instance Linear + row-major Flatten exactly.
    * All post-flatten widths padded to 128-lane multiples with zeros (inert).
    * Matmul operands -> bf16; biases / predictor weights stay f32.
    """
    D, H1 = w1.shape
    FLAT = n_instance * H1
    ID = n_instance * D
    H2, E = w2.shape[1], w3.shape[1]
    IDp = _round_up(ID, LANES)
    FLATp = _round_up(FLAT, LANES)
    H2p = _round_up(H2, LANES)
    Ep = _round_up(E, LANES)

    w1d = jnp.zeros((IDp, FLATp), jnp.float32)
    for i in range(n_instance):
        w1d = w1d.at[i * D:(i + 1) * D, i * H1:(i + 1) * H1].set(w1)
    b1t = jnp.zeros((1, FLATp), jnp.float32).at[:, :FLAT].set(
        jnp.tile(b1, (1, n_instance)))

    w2p = jnp.zeros((FLATp, H2p), jnp.float32).at[:FLAT, :H2].set(w2)
    b2p = jnp.pad(b2, ((0, 0), (0, H2p - H2)))
    w3p = jnp.zeros((H2p, Ep), jnp.float32).at[:H2, :E].set(w3)
    b3p = jnp.pad(b3, ((0, 0), (0, Ep - E)))
    wpp = jnp.pad(wp.reshape(1, E), ((0, 0), (0, Ep - E)))  # predictor as row

    return (w1d.astype(jnp.bfloat16), b1t,
            w2p.astype(jnp.bfloat16), b2p,
            w3p.astype(jnp.bfloat16), b3p,
            wpp, bp)


def reference_forward(params, x1, x2):
    # Pure-JAX f32 reference (unpadded params) for correctness.
    w1, b1, w2, b2, w3, b3, wp, bp = params

    def enc(x):
        h = jax.nn.relu(x @ w1 + b1)           # (B, I, H1)
        h = h.reshape(x.shape[0], -1)          # nn.Flatten
        h = jax.nn.relu(h @ w2 + b2)
        return h @ w3 + b3

    dis = jnp.abs(enc(x1) - enc(x2))
    return (dis @ wp + bp).reshape(-1)


# ---------------------------------- main -----------------------------------

if __name__ == "__main__":
    # Small shapes consistent with the module: input_dim = (n_instance, n_dim).
    B, I, D, H = 4, 8, 32, 32           # batch, n_instance, n_dim, hidden_dim

    # Layer sizes exactly as SiameseNetwork.__init__ derives them (defaults):
    FLAT = I * H                        # after Flatten
    H2 = int(FLAT / (1.0 + 3.0 * 1.0))  # decoder div = 4.0   -> 64
    E = int(H2 / (1.0 + 3.0 * 0.75))    # decoder div = 3.25  -> 19 (embed_dim)

    key = jax.random.PRNGKey(0)
    k1, k2, k3, k4, kx1, kx2 = jax.random.split(key, 6)
    w1, b1 = _linear_init(k1, D, H)      # Linear(n_dim, hidden_dim)
    w2, b2 = _linear_init(k2, FLAT, H2)  # Linear(flat, flat/4)
    w3, b3 = _linear_init(k3, H2, E)     # Linear(flat/4, embed_dim)
    wp, bp = _linear_init(k4, E, 1)      # predictor Linear(embed_dim, 1)
    base_params = (w1, b1, w2, b2, w3, b3, wp, bp)
    params = prep_params(*base_params, n_instance=I)

    x1 = jax.random.normal(kx1, (B, I, D), jnp.float32)
    x2 = jax.random.normal(kx2, (B, I, D), jnp.float32)

    out = jax.block_until_ready(siamese_forward(params, x1, x2))
    ref = reference_forward(base_params, x1, x2)

    assert out.shape == (B,), out.shape
    # bf16 MXU operands (f32 accumulate) -> relaxed tolerance vs f32 reference.
    assert jnp.allclose(out, ref, atol=5e-2, rtol=5e-2), (out, ref)
    print("KERNEL_OK")
</pallas_src>

<mosaic_0001>
module attributes {stable_mosaic.version = 11 : i64} {
  func.func @_siamese_kernel(%arg0: i32, %arg1: memref<4x256xbf16, #tpu.memory_space<vmem>>, %arg2: memref<4x256xbf16, #tpu.memory_space<vmem>>, %arg3: memref<256x256xbf16, #tpu.memory_space<vmem>>, %arg4: memref<1x256xf32, #tpu.memory_space<vmem>>, %arg5: memref<256x128xbf16, #tpu.memory_space<vmem>>, %arg6: memref<1x128xf32, #tpu.memory_space<vmem>>, %arg7: memref<128x128xbf16, #tpu.memory_space<vmem>>, %arg8: memref<1x128xf32, #tpu.memory_space<vmem>>, %arg9: memref<1x128xf32, #tpu.memory_space<vmem>>, %arg10: memref<1x1xf32, #tpu.memory_space<vmem>>, %arg11: memref<4x128xf32, #tpu.memory_space<vmem>>) attributes {dimension_semantics = [#tpu.dimension_semantics<parallel>], iteration_bounds = array<i64: 1>, scalar_prefetch = 0 : i64, scratch_operands = 0 : i64, tpu.core_type = #tpu.core_type<tc>, window_params = [{transform_indices = @transform_0, window_bounds = array<i64: 4, 256>}, {transform_indices = @transform_1, window_bounds = array<i64: 4, 256>}, {pipeline_mode = #tpu.pipeline_mode<synchronous>, transform_indices = @transform_2, window_bounds = array<i64: 256, 256>}, {pipeline_mode = #tpu.pipeline_mode<synchronous>, transform_indices = @transform_3, window_bounds = array<i64: 1, 256>}, {pipeline_mode = #tpu.pipeline_mode<synchronous>, transform_indices = @transform_4, window_bounds = array<i64: 256, 128>}, {pipeline_mode = #tpu.pipeline_mode<synchronous>, transform_indices = @transform_5, window_bounds = array<i64: 1, 128>}, {pipeline_mode = #tpu.pipeline_mode<synchronous>, transform_indices = @transform_6, window_bounds = array<i64: 128, 128>}, {pipeline_mode = #tpu.pipeline_mode<synchronous>, transform_indices = @transform_7, window_bounds = array<i64: 1, 128>}, {pipeline_mode = #tpu.pipeline_mode<synchronous>, transform_indices = @transform_8, window_bounds = array<i64: 1, 128>}, {pipeline_mode = #tpu.pipeline_mode<synchronous>, transform_indices = @transform_9, window_bounds = array<i64: 1, 1>}, {transform_indices = @transform_10, window_bounds = array<i64: 4, 128>}]} {
    %c0 = arith.constant 0 : index
    %c0_0 = arith.constant 0 : index
    %0 = vector.load %arg1[%c0, %c0_0] : memref<4x256xbf16, #tpu.memory_space<vmem>>, vector<4x256xbf16>
    %c0_1 = arith.constant 0 : index
    %c0_2 = arith.constant 0 : index
    %1 = vector.load %arg2[%c0_1, %c0_2] : memref<4x256xbf16, #tpu.memory_space<vmem>>, vector<4x256xbf16>
    %2 = tpu.concatenate %0, %1 in 0 : vector<4x256xbf16>, vector<4x256xbf16> -> vector<8x256xbf16>
    %c0_3 = arith.constant 0 : index
    %c0_4 = arith.constant 0 : index
    %3 = vector.load %arg3[%c0_3, %c0_4] : memref<256x256xbf16, #tpu.memory_space<vmem>>, vector<256x256xbf16>
    %cst = arith.constant dense<0.000000e+00> : vector<8x256xf32>
    %4 = tpu.matmul %2, %3, %cst {dimension_numbers = #tpu.dot_dimension_numbers<[1], [0], [0], [1], [0, 0, 1, 1], [], []>} : vector<8x256xbf16>, vector<256x256xbf16>, vector<8x256xf32> -> vector<8x256xf32>
    %c0_5 = arith.constant 0 : index
    %c0_6 = arith.constant 0 : index
    %5 = vector.load %arg4[%c0_5, %c0_6] : memref<1x256xf32, #tpu.memory_space<vmem>>, vector<1x256xf32>
    %6 = vector.broadcast %5 : vector<1x256xf32> to vector<8x256xf32>
    %7 = arith.addf %4, %6 : vector<8x256xf32>
    %cst_7 = arith.constant 0.000000e+00 : f32
    %8 = vector.broadcast %cst_7 : f32 to vector<8x256xf32>
    %9 = arith.maximumf %7, %8 : vector<8x256xf32>
    %10 = arith.truncf %9 : vector<8x256xf32> to vector<8x256xbf16>
    %c0_8 = arith.constant 0 : index
    %c0_9 = arith.constant 0 : index
    %11 = vector.load %arg5[%c0_8, %c0_9] : memref<256x128xbf16, #tpu.memory_space<vmem>>, vector<256x128xbf16>
    %cst_10 = arith.constant dense<0.000000e+00> : vector<8x128xf32>
    %12 = tpu.matmul %10, %11, %cst_10 {dimension_numbers = #tpu.dot_dimension_numbers<[1], [0], [0], [1], [0, 0, 1, 1], [], []>} : vector<8x256xbf16>, vector<256x128xbf16>, vector<8x128xf32> -> vector<8x128xf32>
    %c0_11 = arith.constant 0 : index
    %c0_12 = arith.constant 0 : index
    %13 = vector.load %arg6[%c0_11, %c0_12] : memref<1x128xf32, #tpu.memory_space<vmem>>, vector<1x128xf32>
    %14 = vector.broadcast %13 : vector<1x128xf32> to vector<8x128xf32>
    %15 = arith.addf %12, %14 : vector<8x128xf32>
    %cst_13 = arith.constant 0.000000e+00 : f32
    %16 = vector.broadcast %cst_13 : f32 to vector<8x128xf32>
    %17 = arith.maximumf %15, %16 : vector<8x128xf32>
    %18 = arith.truncf %17 : vector<8x128xf32> to vector<8x128xbf16>
    %c0_14 = arith.constant 0 : index
    %c0_15 = arith.constant 0 : index
    %19 = vector.load %arg7[%c0_14, %c0_15] : memref<128x128xbf16, #tpu.memory_space<vmem>>, vector<128x128xbf16>
    %cst_16 = arith.constant dense<0.000000e+00> : vector<8x128xf32>
    %20 = tpu.matmul %18, %19, %cst_16 {dimension_numbers = #tpu.dot_dimension_numbers<[1], [0], [0], [1], [0, 0, 1, 1], [], []>} : vector<8x128xbf16>, vector<128x128xbf16>, vector<8x128xf32> -> vector<8x128xf32>
    %c0_17 = arith.constant 0 : index
    %c0_18 = arith.constant 0 : index
    %21 = vector.load %arg8[%c0_17, %c0_18] : memref<1x128xf32, #tpu.memory_space<vmem>>, vector<1x128xf32>
    %22 = vector.broadcast %21 : vector<1x128xf32> to vector<8x128xf32>
    %23 = arith.addf %20, %22 : vector<8x128xf32>
    %24 = vector.extract_strided_slice %23 {offsets = [0, 0], sizes = [4, 128], strides = [1, 1]} : vector<8x128xf32> to vector<4x128xf32>
    %25 = vector.extract_strided_slice %23 {offsets = [4, 0], sizes = [4, 128], strides = [1, 1]} : vector<8x128xf32> to vector<4x128xf32>
    %26 = arith.subf %24, %25 : vector<4x128xf32>
    %27 = math.absf %26 : vector<4x128xf32>
    %c0_19 = arith.constant 0 : index
    %c0_20 = arith.constant 0 : index
    %28 = vector.load %arg9[%c0_19, %c0_20] : memref<1x128xf32, #tpu.memory_space<vmem>>, vector<1x128xf32>
    %29 = vector.broadcast %28 : vector<1x128xf32> to vector<4x128xf32>
    %30 = arith.mulf %27, %29 : vector<4x128xf32>
    %cst_21 = arith.constant dense<0.000000e+00> : vector<4xf32>
    %31 = vector.multi_reduction <add>, %30, %cst_21 [1] : vector<4x128xf32> to vector<4xf32>
    %32 = vector.shape_cast %31 : vector<4xf32> to vector<4x1xf32>
    %c0_22 = arith.constant 0 : index
    %c0_23 = arith.constant 0 : index
    %33 = vector.load %arg10[%c0_22, %c0_23] : memref<1x1xf32, #tpu.memory_space<vmem>>, vector<1x1xf32>
    %34 = vector.broadcast %33 : vector<1x1xf32> to vector<4x1xf32>
    %35 = arith.addf %32, %34 : vector<4x1xf32>
    %36 = vector.shape_cast %35 : vector<4x1xf32> to vector<4x1xf32>
    %37 = vector.broadcast %36 : vector<4x1xf32> to vector<4x128xf32>
    %c0_24 = arith.constant 0 : index
    %c0_25 = arith.constant 0 : index
    %38 = vector.load %arg11[%c0_24, %c0_25] : memref<4x128xf32, #tpu.memory_space<vmem>>, vector<4x128xf32>
    tpu.vector_store %arg11[%c0_24, %c0_25], %37 {strides = array<i32>} : memref<4x128xf32, #tpu.memory_space<vmem>>, vector<4x128xf32>,
    return
  }
  func.func @transform_0(%arg0: i32) -> (i32, i32) {
    %c0_i32 = arith.constant 0 : i32
    %c0_i32_0 = arith.constant 0 : i32
    return %arg0, %c0_i32 : i32, i32
  }
  func.func @transform_1(%arg0: i32) -> (i32, i32) {
    %c0_i32 = arith.constant 0 : i32
    %c0_i32_0 = arith.constant 0 : i32
    return %arg0, %c0_i32 : i32, i32
  }
  func.func @transform_2(%arg0: i32) -> (i32, i32) {
    %c0_i32 = arith.constant 0 : i32
    %c0_i32_0 = arith.constant 0 : i32
    %c0_i32_1 = arith.constant 0 : i32
    return %c0_i32, %c0_i32_0 : i32, i32
  }
  func.func @transform_3(%arg0: i32) -> (i32, i32) {
    %c0_i32 = arith.constant 0 : i32
    %c0_i32_0 = arith.constant 0 : i32
    %c0_i32_1 = arith.constant 0 : i32
    return %c0_i32, %c0_i32_0 : i32, i32
  }
  func.func @transform_4(%arg0: i32) -> (i32, i32) {
    %c0_i32 = arith.constant 0 : i32
    %c0_i32_0 = arith.constant 0 : i32
    %c0_i32_1 = arith.constant 0 : i32
    return %c0_i32, %c0_i32_0 : i32, i32
  }
  func.func @transform_5(%arg0: i32) -> (i32, i32) {
    %c0_i32 = arith.constant 0 : i32
    %c0_i32_0 = arith.constant 0 : i32
    %c0_i32_1 = arith.constant 0 : i32
    return %c0_i32, %c0_i32_0 : i32, i32
  }
  func.func @transform_6(%arg0: i32) -> (i32, i32) {
    %c0_i32 = arith.constant 0 : i32
    %c0_i32_0 = arith.constant 0 : i32
    %c0_i32_1 = arith.constant 0 : i32
    return %c0_i32, %c0_i32_0 : i32, i32
  }
  func.func @transform_7(%arg0: i32) -> (i32, i32) {
    %c0_i32 = arith.constant 0 : i32
    %c0_i32_0 = arith.constant 0 : i32
    %c0_i32_1 = arith.constant 0 : i32
    return %c0_i32, %c0_i32_0 : i32, i32
  }
  func.func @transform_8(%arg0: i32) -> (i32, i32) {
    %c0_i32 = arith.constant 0 : i32
    %c0_i32_0 = arith.constant 0 : i32
    %c0_i32_1 = arith.constant 0 : i32
    return %c0_i32, %c0_i32_0 : i32, i32
  }
  func.func @transform_9(%arg0: i32) -> (i32, i32) {
    %c0_i32 = arith.constant 0 : i32
    %c0_i32_0 = arith.constant 0 : i32
    %c0_i32_1 = arith.constant 0 : i32
    return %c0_i32, %c0_i32_0 : i32, i32
  }
  func.func @transform_10(%arg0: i32) -> (i32, i32) {
    %c0_i32 = arith.constant 0 : i32
    %c0_i32_0 = arith.constant 0 : i32
    return %arg0, %c0_i32 : i32, i32
  }
}

</mosaic_0001>

<llo_original>
// kernel: tpu_custom_call.1
$region0: #{tpu_custom_call.1}
  #allocation0 [shape = 'u32[]', space=smem, size = 0x4, offset = 0x4, fixed_abs, tag = 'smem constant byte address 0x4 - core index']
  #allocation1 [shape = 'u32[144,128]{1,0:T(1,128)}', space=vmem, size = 0x12000, scoped, tag = 'internal scratch']
  #allocation2 [shape = 'f32[1,1]{1,0:T(1,128)S(1)}', space=vmem, size = 0x200, scoped, tag = 'scoped memory for tpu_custom_call.1']
  %s0 = inlined_call_operand.hbm [shape: bf16[4,256], index: 0, kind: input, shape index: {}]
  %s1 = inlined_call_operand.vmem [shape: bf16[4,256], index: 1, kind: input, shape index: {}]
  %s2 = inlined_call_operand.hbm [shape: bf16[256,256], index: 2, kind: input, shape index: {}]
  %s3 = inlined_call_operand.vmem [shape: f32[1,256], index: 3, kind: input, shape index: {}]
  %s4 = inlined_call_operand.hbm [shape: bf16[256,128], index: 4, kind: input, shape index: {}]
  %s5 = inlined_call_operand.vmem [shape: f32[1,128], index: 5, kind: input, shape index: {}]
  %s6 = inlined_call_operand.hbm [shape: bf16[128,128], index: 6, kind: input, shape index: {}]
  %s7 = inlined_call_operand.vmem [shape: f32[1,128], index: 7, kind: input, shape index: {}]
  %s8 = inlined_call_operand.vmem [shape: f32[1,128], index: 8, kind: input, shape index: {}]
  %s9 = inlined_call_operand.<no memory space> [shape: f32[1,1], index: 9, kind: input, shape index: {}]
  %s10 = inlined_call_operand.hbm [shape: f32[4,128], index: 10, kind: output, shape index: {}]
  %s11 = sld [smem:[#allocation0]]
  $region66: #{tpu_custom_call.1} parent=0
    _
  %s13 = ssub.s32 1, %s11
  %s14 = scalar_select 0, %s13, %s11
  %v15 = vstv %s9
  %16 = vst [vmem:[#allocation2] sm:$0x1] %v15
  $region1: #{tpu_custom_call.1} parent=0
    #allocation3 [shape = 'u8[2048]{0}', space=vmem, size = 0x800, scoped, tag = 'input window, operand 0, single buffered']
    #allocation4 [shape = 's32[1]{0}', space=sflag, size = 0x4, scoped, tag = 'scoped memory for tpu_custom_call.1']
    #allocation5 [shape = 's32[1]{0}', space=sflag, size = 0x4, scoped, tag = 'scoped memory for tpu_custom_call.1']
    #allocation6 [shape = 'u8[131072]{0}', space=vmem, size = 0x20000, scoped, tag = 'input window, operand 2, single buffered']
    #allocation7 [shape = 's32[1]{0}', space=sflag, size = 0x4, scoped, tag = 'scoped memory for tpu_custom_call.1']
    #allocation8 [shape = 'u8[65536]{0}', space=vmem, size = 0x10000, scoped, tag = 'input window, operand 4, single buffered']
    #allocation9 [shape = 'u8[32768]{0}', space=vmem, size = 0x8000, scoped, tag = 'input window, operand 6, single buffered']
    #allocation10 [shape = 's32[1]{0}', space=sflag, size = 0x4, scoped, tag = 'scoped memory for tpu_custom_call.1']
    #allocation11 [shape = 'u8[2048]{0}', space=vmem, size = 0x800, scoped, tag = 'output window, operand 0, single buffered']
    %17 = vsyncpa [#allocation4], 0
    %18 = vsyncpa [#allocation7], 0
    %19 = vsyncpa [#allocation10], 0
    %20 = vsyncpa [#allocation5], 0
    // Predicated region
    $region2: #{tpu_custom_call.1} parent=1 // pred_check
      _
    $region3: #{tpu_custom_call.1} parent=1 // pred_check_branch
      %22 = sbr.rel (0) target = $region5
    $region4: #{tpu_custom_call.1} parent=1 // pred_region
      %s24 = ssub.s32 64, 64
      %25 = vsyncadd [#allocation4], %s24
      %s27 = sshll.u32 [#allocation3], 4
      %s28 = int_to_ptr.vmem [resolvable:$true] %s27
      %30 = dma.hbm_to_vmem [thread:$0]  %s0, 64, %s28, [#allocation4]
    $region5: #{tpu_custom_call.1} parent=1 // pred_fallthru
      _
    // Predicated region
    $region6: #{tpu_custom_call.1} parent=1 // pred_check
      _
    $region7: #{tpu_custom_call.1} parent=1 // pred_check_branch
      %32 = sbr.rel (0) target = $region9
    $region8: #{tpu_custom_call.1} parent=1 // pred_region
      _
    $region9: #{tpu_custom_call.1} parent=1 // pred_fallthru
      _
    // Predicated region
    $region10: #{tpu_custom_call.1} parent=1 // pred_check
      _
    $region11: #{tpu_custom_call.1} parent=1 // pred_check_branch
      %34 = sbr.rel (0) target = $region13
    $region12: #{tpu_custom_call.1} parent=1 // pred_region
      %s36 = ssub.s32 4096, 4096
      %37 = vsyncadd [#allocation7], %s36
      %s38 = sshll.u32 [#allocation6], 4
      %s39 = int_to_ptr.vmem [resolvable:$true] %s38
      %44 = dma.hbm_to_vmem [thread:$0]  %s2, 4096, %s39, [#allocation7], 128, 128, 8
    $region13: #{tpu_custom_call.1} parent=1 // pred_fallthru
      _
    // Predicated region
    $region14: #{tpu_custom_call.1} parent=1 // pred_check
      _
    $region15: #{tpu_custom_call.1} parent=1 // pred_check_branch
      %46 = sbr.rel (0) target = $region17
    $region16: #{tpu_custom_call.1} parent=1 // pred_region
      _
    $region17: #{tpu_custom_call.1} parent=1 // pred_fallthru
      _
    // Predicated region
    $region18: #{tpu_custom_call.1} parent=1 // pred_check
      _
    $region19: #{tpu_custom_call.1} parent=1 // pred_check_branch
      %48 = sbr.rel (0) target = $region21
    $region20: #{tpu_custom_call.1} parent=1 // pred_region
      %s50 = ssub.s32 2048, 2048
      %51 = vsyncadd [#allocation7], %s50
      %s52 = sshll.u32 [#allocation8], 4
      %s53 = int_to_ptr.vmem [resolvable:$true] %s52
      %58 = dma.hbm_to_vmem [thread:$0]  %s4, 2048, %s53, [#allocation7], 64, 64, 4
    $region21: #{tpu_custom_call.1} parent=1 // pred_fallthru
      _
    // Predicated region
    $region22: #{tpu_custom_call.1} parent=1 // pred_check
      _
    $region23: #{tpu_custom_call.1} parent=1 // pred_check_branch
      %60 = sbr.rel (0) target = $region25
    $region24: #{tpu_custom_call.1} parent=1 // pred_region
      _
    $region25: #{tpu_custom_call.1} parent=1 // pred_fallthru
      _
    // Predicated region
    $region26: #{tpu_custom_call.1} parent=1 // pred_check
      _
    $region27: #{tpu_custom_call.1} parent=1 // pred_check_branch
      %62 = sbr.rel (0) target = $region29
    $region28: #{tpu_custom_call.1} parent=1 // pred_region
      %s64 = ssub.s32 1024, 1024
      %65 = vsyncadd [#allocation10], %s64
      %s66 = sshll.u32 [#allocation9], 4
      %s67 = int_to_ptr.vmem [resolvable:$true] %s66
      %72 = dma.hbm_to_vmem [thread:$0]  %s6, 1024, %s67, [#allocation10], 64, 64, 4
    $region29: #{tpu_custom_call.1} parent=1 // pred_fallthru
      _
    // Predicated region
    $region30: #{tpu_custom_call.1} parent=1 // pred_check
      _
    $region31: #{tpu_custom_call.1} parent=1 // pred_check_branch
      %74 = sbr.rel (0) target = $region33
    $region32: #{tpu_custom_call.1} parent=1 // pred_region
      _
    $region33: #{tpu_custom_call.1} parent=1 // pred_fallthru
      _
    // Predicated region
    $region34: #{tpu_custom_call.1} parent=1 // pred_check
      _
    $region35: #{tpu_custom_call.1} parent=1 // pred_check_branch
      %76 = sbr.rel (0) target = $region37
    $region36: #{tpu_custom_call.1} parent=1 // pred_region
      _
    $region37: #{tpu_custom_call.1} parent=1 // pred_fallthru
      _
    // Predicated region
    $region38: #{tpu_custom_call.1} parent=1 // pred_check
      _
    $region39: #{tpu_custom_call.1} parent=1 // pred_check_branch
      %78 = sbr.rel (0) target = $region41
    $region40: #{tpu_custom_call.1} parent=1 // pred_region
      _
    $region41: #{tpu_custom_call.1} parent=1 // pred_fallthru
      _
    // Predicated region
    $region42: #{tpu_custom_call.1} parent=1 // pred_check
      _
    $region43: #{tpu_custom_call.1} parent=1 // pred_check_branch
      %80 = sbr.rel (0) target = $region45
    $region44: #{tpu_custom_call.1} parent=1 // pred_region
      %81 = dma.done [#allocation4], 64
    $region45: #{tpu_custom_call.1} parent=1 // pred_fallthru
      _
    // Predicated region
    $region46: #{tpu_custom_call.1} parent=1 // pred_check
      _
    $region47: #{tpu_custom_call.1} parent=1 // pred_check_branch
      %83 = sbr.rel (0) target = $region49
    $region48: #{tpu_custom_call.1} parent=1 // pred_region
      %84 = dma.done [#allocation7], 4096
    $region49: #{tpu_custom_call.1} parent=1 // pred_fallthru
      _
    // Predicated region
    $region50: #{tpu_custom_call.1} parent=1 // pred_check
      _
    $region51: #{tpu_custom_call.1} parent=1 // pred_check_branch
      %86 = sbr.rel (0) target = $region53
    $region52: #{tpu_custom_call.1} parent=1 // pred_region
      %87 = dma.done [#allocation7], 2048
    $region53: #{tpu_custom_call.1} parent=1 // pred_fallthru
      _
    // Predicated region
    $region54: #{tpu_custom_call.1} parent=1 // pred_check
      _
    $region55: #{tpu_custom_call.1} parent=1 // pred_check_branch
      %89 = sbr.rel (0) target = $region57
    $region56: #{tpu_custom_call.1} parent=1 // pred_region
      %90 = dma.done [#allocation10], 1024
    $region57: #{tpu_custom_call.1} parent=1 // pred_fallthru
      _
    %v92 = vld [vmem:[#allocation3] sm:$0xf]
    %v93 = vld [vmem:[%s1] sm:$0xf]
    %v96 = vunpack.c.l.s4 1983009808
    %v97 = vunpack.c.0.s8 %v96
    %v98 = vlaneseq
    %v99 = vshrl.u32 %v98, 7
    %v100 = vsub.s32 %v97, %v99
    %v101 = vrot.slane %v92, %v100
    %v102 = vcombine.high %v101, %v101
    %v104 = vcombine.low %v93, %v93
    %v106 = vunpack.c.l.s4 1983009808
    %v107 = vunpack.c.0.s8 %v106
    %v108 = vlaneseq
    %v109 = vshrl.u32 %v108, 7
    %v110 = vsub.s32 %v107, %v109
    %v111 = vrot.slane %v104, %v110
    %v112 = vcombine.high %v111, %v111
    %vm113 = vcmask 1041408
    %v116 = vsel %vm113, %v101, %v111
    %v120 = vsel %vm113, %v102, %v112
    %v122 = vld [vmem:[#allocation6] sm:$0xff]
    %v123 = vld [vmem:[#allocation6 + $0x8] sm:$0xff]
    %v124 = vld [vmem:[#allocation6 + $0x10] sm:$0xff]
    %v125 = vld [vmem:[#allocation6 + $0x18] sm:$0xff]
    %v126 = vld [vmem:[#allocation6 + $0x20] sm:$0xff]
    %v127 = vld [vmem:[#allocation6 + $0x28] sm:$0xff]
    %v128 = vld [vmem:[#allocation6 + $0x30] sm:$0xff]
    %v129 = vld [vmem:[#allocation6 + $0x38] sm:$0xff]
    %v130 = vld [vmem:[#allocation6 + $0x40] sm:$0xff]
    %v131 = vld [vmem:[#allocation6 + $0x48] sm:$0xff]
    %v132 = vld [vmem:[#allocation6 + $0x50] sm:$0xff]
    %v133 = vld [vmem:[#allocation6 + $0x58] sm:$0xff]
    %v134 = vld [vmem:[#allocation6 + $0x60] sm:$0xff]
    %v135 = vld [vmem:[#allocation6 + $0x68] sm:$0xff]
    %v136 = vld [vmem:[#allocation6 + $0x70] sm:$0xff]
    %v137 = vld [vmem:[#allocation6 + $0x78] sm:$0xff]
    %v138 = vld [vmem:[#allocation6 + $0x80] sm:$0xff]
    %v139 = vld [vmem:[#allocation6 + $0x88] sm:$0xff]
    %v140 = vld [vmem:[#allocation6 + $0x90] sm:$0xff]
    %v141 = vld [vmem:[#allocation6 + $0x98] sm:$0xff]
    %v142 = vld [vmem:[#allocation6 + $0xa0] sm:$0xff]
    %v143 = vld [vmem:[#allocation6 + $0xa8] sm:$0xff]
    %v144 = vld [vmem:[#allocation6 + $0xb0] sm:$0xff]
    %v145 = vld [vmem:[#allocation6 + $0xb8] sm:$0xff]
    %v146 = vld [vmem:[#allocation6 + $0xc0] sm:$0xff]
    %v147 = vld [vmem:[#allocation6 + $0xc8] sm:$0xff]
    %v148 = vld [vmem:[#allocation6 + $0xd0] sm:$0xff]
    %v149 = vld [vmem:[#allocation6 + $0xd8] sm:$0xff]
    %v150 = vld [vmem:[#allocation6 + $0xe0] sm:$0xff]
    %v151 = vld [vmem:[#allocation6 + $0xe8] sm:$0xff]
    %v152 = vld [vmem:[#allocation6 + $0xf0] sm:$0xff]
    %v153 = vld [vmem:[#allocation6 + $0xf8] sm:$0xff]
    %v154 = vld [vmem:[%s3] sm:$0x3]
    %v156 = vlaneseq
    %v157 = vshrl.u32 %v156, 7
    %v158 = vsub.s32 0, %v157
    %v159 = vrot.slane %v154, %v158
    %v160 = vlaneseq
    %v161 = vshrl.u32 %v160, 7
    %v162 = vsub.s32 1, %v161
    %v163 = vrot.slane %v154, %v162
    %v198 = vunpack.c.l.b16 %v122
    %v199 = vunpack.c.h.b16 %v122
    %v200 = vunpack.c.l.b16 %v123
    %v201 = vunpack.c.h.b16 %v123
    %v202 = vunpack.c.l.b16 %v124
    %v203 = vunpack.c.h.b16 %v124
    %v204 = vunpack.c.l.b16 %v125
    %v205 = vunpack.c.h.b16 %v125
    %v206 = vunpack.c.l.b16 %v126
    %v207 = vunpack.c.h.b16 %v126
    %v208 = vunpack.c.l.b16 %v127
    %v209 = vunpack.c.h.b16 %v127
    %v210 = vunpack.c.l.b16 %v128
    %v211 = vunpack.c.h.b16 %v128
    %v212 = vunpack.c.l.b16 %v129
    %v213 = vunpack.c.h.b16 %v129
    %v214 = vunpack.c.l.b16 %v130
    %v215 = vunpack.c.h.b16 %v130
    %v216 = vunpack.c.l.b16 %v131
    %v217 = vunpack.c.h.b16 %v131
    %v218 = vunpack.c.l.b16 %v132
    %v219 = vunpack.c.h.b16 %v132
    %v220 = vunpack.c.l.b16 %v133
    %v221 = vunpack.c.h.b16 %v133
    %v222 = vunpack.c.l.b16 %v134
    %v223 = vunpack.c.h.b16 %v134
    %v224 = vunpack.c.l.b16 %v135
    %v225 = vunpack.c.h.b16 %v135
    %v226 = vunpack.c.l.b16 %v136
    %v227 = vunpack.c.h.b16 %v136
    %v228 = vunpack.c.l.b16 %v137
    %v229 = vunpack.c.h.b16 %v137
    %v230 = vunpack.c.l.b16 %v138
    %v231 = vunpack.c.h.b16 %v138
    %v232 = vunpack.c.l.b16 %v139
    %v233 = vunpack.c.h.b16 %v139
    %v234 = vunpack.c.l.b16 %v140
    %v235 = vunpack.c.h.b16 %v140
    %v236 = vunpack.c.l.b16 %v141
    %v237 = vunpack.c.h.b16 %v141
    %v238 = vunpack.c.l.b16 %v142
    %v239 = vunpack.c.h.b16 %v142
    %v240 = vunpack.c.l.b16 %v143
    %v241 = vunpack.c.h.b16 %v143
    %v242 = vunpack.c.l.b16 %v144
    %v243 = vunpack.c.h.b16 %v144
    %v244 = vunpack.c.l.b16 %v145
    %v245 = vunpack.c.h.b16 %v145
    %v246 = vunpack.c.l.b16 %v146
    %v247 = vunpack.c.h.b16 %v146
    %v248 = vunpack.c.l.b16 %v147
    %v249 = vunpack.c.h.b16 %v147
    %v250 = vunpack.c.l.b16 %v148
    %v251 = vunpack.c.h.b16 %v148
    %v252 = vunpack.c.l.b16 %v149
    %v253 = vunpack.c.h.b16 %v149
    %v254 = vunpack.c.l.b16 %v150
    %v255 = vunpack.c.h.b16 %v150
    %v256 = vunpack.c.l.b16 %v151
    %v257 = vunpack.c.h.b16 %v151
    %v258 = vunpack.c.l.b16 %v152
    %v259 = vunpack.c.h.b16 %v152
    %v260 = vunpack.c.l.b16 %v153
    %v261 = vunpack.c.h.b16 %v153
    %v262 = vpack.c.b16 %v200, %v198
    %v263 = vpack.c.b16 %v201, %v199
    %v264 = vpack.c.b16 %v204, %v202
    %v265 = vpack.c.b16 %v205, %v203
    %v266 = vpack.c.b16 %v208, %v206
    %v267 = vpack.c.b16 %v209, %v207
    %v268 = vpack.c.b16 %v212, %v210
    %v269 = vpack.c.b16 %v213, %v211
    %v270 = vpack.c.b16 %v216, %v214
    %v271 = vpack.c.b16 %v217, %v215
    %v272 = vpack.c.b16 %v220, %v218
    %v273 = vpack.c.b16 %v221, %v219
    %v274 = vpack.c.b16 %v224, %v222
    %v275 = vpack.c.b16 %v225, %v223
    %v276 = vpack.c.b16 %v228, %v226
    %v277 = vpack.c.b16 %v229, %v227
    %v278 = vpack.c.b16 %v232, %v230
    %v279 = vpack.c.b16 %v233, %v231
    %v280 = vpack.c.b16 %v236, %v234
    %v281 = vpack.c.b16 %v237, %v235
    %v282 = vpack.c.b16 %v240, %v238
    %v283 = vpack.c.b16 %v241, %v239
    %v284 = vpack.c.b16 %v244, %v242
    %v285 = vpack.c.b16 %v245, %v243
    %v286 = vpack.c.b16 %v248, %v246
    %v287 = vpack.c.b16 %v249, %v247
    %v288 = vpack.c.b16 %v252, %v250
    %v289 = vpack.c.b16 %v253, %v251
    %v290 = vpack.c.b16 %v256, %v254
    %v291 = vpack.c.b16 %v257, %v255
    %v292 = vpack.c.b16 %v260, %v258
    %v293 = vpack.c.b16 %v261, %v259
    %326 = vmatprep.subr.bf16.mxu0 %v263
    %327 = vmatpush1.bf16.msra.mxu0 %v262
    %328 = vmatprep.subr.bf16.mxu0 %v265
    %329 = vmatpush1.bf16.msra.mxu0 %v264
    %330 = vmatprep.subr.bf16.mxu0 %v267
    %331 = vmatpush1.bf16.msra.mxu0 %v266
    %332 = vmatprep.subr.bf16.mxu0 %v269
    %333 = vmatpush1.bf16.msra.mxu0 %v268
    %334 = vmatprep.subr.bf16.mxu0 %v271
    %335 = vmatpush1.bf16.msra.mxu0 %v270
    %336 = vmatprep.subr.bf16.mxu0 %v273
    %337 = vmatpush1.bf16.msra.mxu0 %v272
    %338 = vmatprep.subr.bf16.mxu0 %v275
    %339 = vmatpush1.bf16.msra.mxu0 %v274
    %340 = vmatprep.subr.bf16.mxu0 %v277
    %341 = vmatpush1.bf16.msra.mxu0 %v276
    %342 = vmatprep.subr.bf16.mxu0 %v279
    %343 = vmatpush1.bf16.msra.mxu0 %v278
    %344 = vmatprep.subr.bf16.mxu0 %v281
    %345 = vmatpush1.bf16.msra.mxu0 %v280
    %346 = vmatprep.subr.bf16.mxu0 %v283
    %347 = vmatpush1.bf16.msra.mxu0 %v282
    %348 = vmatprep.subr.bf16.mxu0 %v285
    %349 = vmatpush1.bf16.msra.mxu0 %v284
    %350 = vmatprep.subr.bf16.mxu0 %v287
    %351 = vmatpush1.bf16.msra.mxu0 %v286
    %352 = vmatprep.subr.bf16.mxu0 %v289
    %353 = vmatpush1.bf16.msra.mxu0 %v288
    %354 = vmatprep.subr.bf16.mxu0 %v291
    %355 = vmatpush1.bf16.msra.mxu0 %v290
    %356 = vmatprep.subr.bf16.mxu0 %v293
    %357 = vmatpush1.bf16.msra.mxu0 %v292
    %358 = vmatprep.mubr.bf16.mxu0 %v120
    %359 = vmatmul.mubr.bf16.gmra.mrb[0].mxu0 %v116
    %v360 = vpop.f32.mrb[0].mxu0
    %v361 = vadd.f32 %v159, %v360
    %v362 = vpop.f32.mrb[0].mxu0
    %v363 = vadd.f32 %v163, %v362
    %v364 = vpop.f32.mrb[0].mxu0
    %v365 = vpop.f32.mrb[0].mxu0
    %366 = vdwg.mxu0
    %v367 = vmax.f32 %v361, 0.0
    %v368 = vmax.f32 %v363, 0.0
    %v369 = vpack.c.bf16 %v367, %v367
    %v370 = vpack.c.bf16 %v368, %v368
    %v371 = vld [vmem:[#allocation8] sm:$0xf]
    %v372 = vld [vmem:[#allocation8 + $0x4] sm:$0xf]
    %v373 = vld [vmem:[#allocation8 + $0x8] sm:$0xf]
    %v374 = vld [vmem:[#allocation8 + $0xc] sm:$0xf]
    %v375 = vld [vmem:[#allocation8 + $0x10] sm:$0xf]
    %v376 = vld [vmem:[#allocation8 + $0x14] sm:$0xf]
    %v377 = vld [vmem:[#allocation8 + $0x18] sm:$0xf]
    %v378 = vld [vmem:[#allocation8 + $0x1c] sm:$0xf]
    %v379 = vld [vmem:[#allocation8 + $0x20] sm:$0xf]
    %v380 = vld [vmem:[#allocation8 + $0x24] sm:$0xf]
    %v381 = vld [vmem:[#allocation8 + $0x28] sm:$0xf]
    %v382 = vld [vmem:[#allocation8 + $0x2c] sm:$0xf]
    %v383 = vld [vmem:[#allocation8 + $0x30] sm:$0xf]
    %v384 = vld [vmem:[#allocation8 + $0x34] sm:$0xf]
    %v385 = vld [vmem:[#allocation8 + $0x38] sm:$0xf]
    %v386 = vld [vmem:[#allocation8 + $0x3c] sm:$0xf]
    %v387 = vld [vmem:[#allocation8 + $0x40] sm:$0xf]
    %v388 = vld [vmem:[#allocation8 + $0x44] sm:$0xf]
    %v389 = vld [vmem:[#allocation8 + $0x48] sm:$0xf]
    %v390 = vld [vmem:[#allocation8 + $0x4c] sm:$0xf]
    %v391 = vld [vmem:[#allocation8 + $0x50] sm:$0xf]
    %v392 = vld [vmem:[#allocation8 + $0x54] sm:$0xf]
    %v393 = vld [vmem:[#allocation8 + $0x58] sm:$0xf]
    %v394 = vld [vmem:[#allocation8 + $0x5c] sm:$0xf]
    %v395 = vld [vmem:[#allocation8 + $0x60] sm:$0xf]
    %v396 = vld [vmem:[#allocation8 + $0x64] sm:$0xf]
    %v397 = vld [vmem:[#allocation8 + $0x68] sm:$0xf]
    %v398 = vld [vmem:[#allocation8 + $0x6c] sm:$0xf]
    %v399 = vld [vmem:[#allocation8 + $0x70] sm:$0xf]
    %v400 = vld [vmem:[#allocation8 + $0x74] sm:$0xf]
    %v401 = vld [vmem:[#allocation8 + $0x78] sm:$0xf]
    %v402 = vld [vmem:[#allocation8 + $0x7c] sm:$0xf]
    %v403 = vld [vmem:[%s5] sm:$0x1]
    %v405 = vlaneseq
    %v406 = vshrl.u32 %v405, 7
    %v407 = vsub.s32 0, %v406
    %v408 = vrot.slane %v403, %v407
    %v442 = vunpack.c.l.b16 %v371
    %v443 = vunpack.c.l.b16 %v372
    %v444 = vunpack.c.l.b16 %v373
    %v445 = vunpack.c.l.b16 %v374
    %v446 = vunpack.c.l.b16 %v375
    %v447 = vunpack.c.l.b16 %v376
    %v448 = vunpack.c.l.b16 %v377
    %v449 = vunpack.c.l.b16 %v378
    %v450 = vunpack.c.l.b16 %v379
    %v451 = vunpack.c.l.b16 %v380
    %v452 = vunpack.c.l.b16 %v381
    %v453 = vunpack.c.l.b16 %v382
    %v454 = vunpack.c.l.b16 %v383
    %v455 = vunpack.c.l.b16 %v384
    %v456 = vunpack.c.l.b16 %v385
    %v457 = vunpack.c.l.b16 %v386
    %v458 = vunpack.c.l.b16 %v387
    %v459 = vunpack.c.l.b16 %v388
    %v460 = vunpack.c.l.b16 %v389
    %v461 = vunpack.c.l.b16 %v390
    %v462 = vunpack.c.l.b16 %v391
    %v463 = vunpack.c.l.b16 %v392
    %v464 = vunpack.c.l.b16 %v393
    %v465 = vunpack.c.l.b16 %v394
    %v466 = vunpack.c.l.b16 %v395
    %v467 = vunpack.c.l.b16 %v396
    %v468 = vunpack.c.l.b16 %v397
    %v469 = vunpack.c.l.b16 %v398
    %v470 = vunpack.c.l.b16 %v399
    %v471 = vunpack.c.l.b16 %v400
    %v472 = vunpack.c.l.b16 %v401
    %v473 = vunpack.c.l.b16 %v402
    %v474 = vpack.c.b16 %v443, %v442
    %v475 = vpack.c.b16 %v445, %v444
    %v476 = vpack.c.b16 %v447, %v446
    %v477 = vpack.c.b16 %v449, %v448
    %v478 = vpack.c.b16 %v451, %v450
    %v479 = vpack.c.b16 %v453, %v452
    %v480 = vpack.c.b16 %v455, %v454
    %v481 = vpack.c.b16 %v457, %v456
    %v482 = vpack.c.b16 %v459, %v458
    %v483 = vpack.c.b16 %v461, %v460
    %v484 = vpack.c.b16 %v463, %v462
    %v485 = vpack.c.b16 %v465, %v464
    %v486 = vpack.c.b16 %v467, %v466
    %v487 = vpack.c.b16 %v469, %v468
    %v488 = vpack.c.b16 %v471, %v470
    %v489 = vpack.c.b16 %v473, %v472
    %506 = vmatprep.subr.bf16.mxu0 0
    %507 = vmatpush1.bf16.msra.mxu0 %v474
    %508 = vmatprep.subr.bf16.mxu0 0
    %509 = vmatpush1.bf16.msra.mxu0 %v475
    %510 = vmatprep.subr.bf16.mxu0 0
    %511 = vmatpush1.bf16.msra.mxu0 %v476
    %512 = vmatprep.subr.bf16.mxu0 0
    %513 = vmatpush1.bf16.msra.mxu0 %v477
    %514 = vmatprep.subr.bf16.mxu0 0
    %515 = vmatpush1.bf16.msra.mxu0 %v478
    %516 = vmatprep.subr.bf16.mxu0 0
    %517 = vmatpush1.bf16.msra.mxu0 %v479
    %518 = vmatprep.subr.bf16.mxu0 0
    %519 = vmatpush1.bf16.msra.mxu0 %v480
    %520 = vmatprep.subr.bf16.mxu0 0
    %521 = vmatpush1.bf16.msra.mxu0 %v481
    %522 = vmatprep.subr.bf16.mxu0 0
    %523 = vmatpush1.bf16.msra.mxu0 %v482
    %524 = vmatprep.subr.bf16.mxu0 0
    %525 = vmatpush1.bf16.msra.mxu0 %v483
    %526 = vmatprep.subr.bf16.mxu0 0
    %527 = vmatpush1.bf16.msra.mxu0 %v484
    %528 = vmatprep.subr.bf16.mxu0 0
    %529 = vmatpush1.bf16.msra.mxu0 %v485
    %530 = vmatprep.subr.bf16.mxu0 0
    %531 = vmatpush1.bf16.msra.mxu0 %v486
    %532 = vmatprep.subr.bf16.mxu0 0
    %533 = vmatpush1.bf16.msra.mxu0 %v487
    %534 = vmatprep.subr.bf16.mxu0 0
    %535 = vmatpush1.bf16.msra.mxu0 %v488
    %536 = vmatprep.subr.bf16.mxu0 0
    %537 = vmatpush1.bf16.msra.mxu0 %v489
    %538 = vmatprep.mubr.bf16.mxu0 %v370
    %539 = vmatmul.mubr.bf16.gmra.mrb[0].mxu0 %v369
    %v540 = vpop.f32.mrb[0].mxu0
    %v541 = vadd.f32 %v408, %v540
    %v542 = vpop.f32.mrb[0].mxu0
    %v543 = vpop.f32.mrb[0].mxu0
    %v544 = vpop.f32.mrb[0].mxu0
    %545 = vdwg.mxu0
    %v546 = vmax.f32 %v541, 0.0
    %v547 = vpack.c.bf16 %v546, %v546
    %v548 = vld [vmem:[#allocation9] sm:$0xf]
    %v549 = vld [vmem:[#allocation9 + $0x4] sm:$0xf]
    %v550 = vld [vmem:[#allocation9 + $0x8] sm:$0xf]
    %v551 = vld [vmem:[#allocation9 + $0xc] sm:$0xf]
    %v552 = vld [vmem:[#allocation9 + $0x10] sm:$0xf]
    %v553 = vld [vmem:[#allocation9 + $0x14] sm:$0xf]
    %v554 = vld [vmem:[#allocation9 + $0x18] sm:$0xf]
    %v555 = vld [vmem:[#allocation9 + $0x1c] sm:$0xf]
    %v556 = vld [vmem:[#allocation9 + $0x20] sm:$0xf]
    %v557 = vld [vmem:[#allocation9 + $0x24] sm:$0xf]
    %v558 = vld [vmem:[#allocation9 + $0x28] sm:$0xf]
    %v559 = vld [vmem:[#allocation9 + $0x2c] sm:$0xf]
    %v560 = vld [vmem:[#allocation9 + $0x30] sm:$0xf]
    %v561 = vld [vmem:[#allocation9 + $0x34] sm:$0xf]
    %v562 = vld [vmem:[#allocation9 + $0x38] sm:$0xf]
    %v563 = vld [vmem:[#allocation9 + $0x3c] sm:$0xf]
    %v564 = vld [vmem:[%s7] sm:$0x1]
    %v566 = vlaneseq
    %v567 = vshrl.u32 %v566, 7
    %v568 = vsub.s32 0, %v567
    %v569 = vrot.slane %v564, %v568
    %v587 = vunpack.c.l.b16 %v548
    %v588 = vunpack.c.l.b16 %v549
    %v589 = vunpack.c.l.b16 %v550
    %v590 = vunpack.c.l.b16 %v551
    %v591 = vunpack.c.l.b16 %v552
    %v592 = vunpack.c.l.b16 %v553
    %v593 = vunpack.c.l.b16 %v554
    %v594 = vunpack.c.l.b16 %v555
    %v595 = vunpack.c.l.b16 %v556
    %v596 = vunpack.c.l.b16 %v557
    %v597 = vunpack.c.l.b16 %v558
    %v598 = vunpack.c.l.b16 %v559
    %v599 = vunpack.c.l.b16 %v560
    %v600 = vunpack.c.l.b16 %v561
    %v601 = vunpack.c.l.b16 %v562
    %v602 = vunpack.c.l.b16 %v563
    %v603 = vpack.c.b16 %v588, %v587
    %v604 = vpack.c.b16 %v590, %v589
    %v605 = vpack.c.b16 %v592, %v591
    %v606 = vpack.c.b16 %v594, %v593
    %v607 = vpack.c.b16 %v596, %v595
    %v608 = vpack.c.b16 %v598, %v597
    %v609 = vpack.c.b16 %v600, %v599
    %v610 = vpack.c.b16 %v602, %v601
    %619 = vmatprep.subr.bf16.mxu0 0
    %620 = vmatpush1.bf16.msra.mxu0 %v603
    %621 = vmatprep.subr.bf16.mxu0 0
    %622 = vmatpush1.bf16.msra.mxu0 %v604
    %623 = vmatprep.subr.bf16.mxu0 0
    %624 = vmatpush1.bf16.msra.mxu0 %v605
    %625 = vmatprep.subr.bf16.mxu0 0
    %626 = vmatpush1.bf16.msra.mxu0 %v606
    %627 = vmatprep.subr.bf16.mxu0 0
    %628 = vmatpush1.bf16.msra.mxu0 %v607
    %629 = vmatprep.subr.bf16.mxu0 0
    %630 = vmatpush1.bf16.msra.mxu0 %v608
    %631 = vmatprep.subr.bf16.mxu0 0
    %632 = vmatpush1.bf16.msra.mxu0 %v609
    %633 = vmatprep.subr.bf16.mxu0 0
    %634 = vmatpush1.bf16.msra.mxu0 %v610
    %635 = vmatprep.subr.bf16.mxu0 0
    %636 = vmatpush1.bf16.msra.mxu0 0
    %637 = vmatprep.subr.bf16.mxu0 0
    %638 = vmatpush1.bf16.msra.mxu0 0
    %639 = vmatprep.subr.bf16.mxu0 0
    %640 = vmatpush1.bf16.msra.mxu0 0
    %641 = vmatprep.subr.bf16.mxu0 0
    %642 = vmatpush1.bf16.msra.mxu0 0
    %643 = vmatprep.subr.bf16.mxu0 0
    %644 = vmatpush1.bf16.msra.mxu0 0
    %645 = vmatprep.subr.bf16.mxu0 0
    %646 = vmatpush1.bf16.msra.mxu0 0
    %647 = vmatprep.subr.bf16.mxu0 0
    %648 = vmatpush1.bf16.msra.mxu0 0
    %649 = vmatprep.subr.bf16.mxu0 0
    %650 = vmatpush1.bf16.msra.mxu0 0
    %651 = vmatprep.mubr.bf16.mxu0 0
    %652 = vmatmul.mubr.bf16.gmra.mrb[0].mxu0 %v547
    %v653 = vpop.f32.mrb[0].mxu0
    %v654 = vadd.f32 %v569, %v653
    %v655 = vpop.f32.mrb[0].mxu0
    %v656 = vpop.f32.mrb[0].mxu0
    %v657 = vpop.f32.mrb[0].mxu0
    %658 = vdwg.mxu0
    %v660 = vrot.slane %v654, 4
    %v662 = vsub.f32 %v654, %v660
    %v663 = vand.u32 2147483647, %v662
    %v664 = vld [vmem:[%s8] sm:$0x1]
    %v666 = vlaneseq
    %v667 = vshrl.u32 %v666, 7
    %v668 = vsub.s32 0, %v667
    %v669 = vrot.slane %v664, %v668
    %v671 = vmul.f32 %v663, %v669
    %vm672 = vcmask 1043456
    %v673 = vsel %vm672, %v671, 0.0
    %674 = vadd.xlane.f32.xlu0 %v673
    %v675 = vpop.xlane.xlu0 %674
    %v676 = vld [vmem:[#allocation2] sm:$0x1]
    %v678 = vlaneseq
    %v679 = vshrl.u32 %v678, 7
    %v680 = vsub.s32 0, %v679
    %v681 = vrot.slane %v676, %v680
    %v683 = vadd.f32 %v675, %v681
    %685 = vset.pattern.permute.xlu0 0
    %686 = vperm.xlu0 %685, %v683
    %v687 = vpop.permute.xlu0 %686
    %689 = vst [vmem:[#allocation11] sm:$0xf] %v687
    // Predicated region
    $region58: #{tpu_custom_call.1} parent=1 // pred_check
      _
    $region59: #{tpu_custom_call.1} parent=1 // pred_check_branch
      %691 = sbr.rel (0) target = $region61
    $region60: #{tpu_custom_call.1} parent=1 // pred_region
      %s693 = ssub.s32 64, 64
      %694 = vsyncadd [#allocation5], %s693
      %s696 = sshll.u32 [#allocation11], 4
      %s697 = int_to_ptr.vmem [resolvable:$true] %s696
      %699 = dma.vmem_to_hbm [thread:$0]  %s697, 64, %s10, [#allocation5]
    $region61: #{tpu_custom_call.1} parent=1 // pred_fallthru
      _
    // Predicated region
    $region62: #{tpu_custom_call.1} parent=1 // pred_check
      _
    $region63: #{tpu_custom_call.1} parent=1 // pred_check_branch
      %701 = sbr.rel (0) target = $region65
    $region64: #{tpu_custom_call.1} parent=1 // pred_region
      %702 = dma.done [#allocation5], 64
    $region65: #{tpu_custom_call.1} parent=1 // pred_fallthru
      _
    %703 = vsyncpa [#allocation4], 1
    %704 = vsyncpa [#allocation7], 1
    %705 = vsyncpa [#allocation10], 1
    %706 = vsyncpa [#allocation5], 1

</llo_original>
